<compile_context>
chip_gen: v5e
topology: v5e:2x2
jax: 0.10.0
libtpu: 0.0.40
codegen_flags: <defaults>
</compile_context>

<pallas_src>
import functools

import jax
import jax.numpy as jnp
from jax.experimental import pallas as pl
from jax.experimental.pallas import tpu as pltpu


def _round_up(x, m):
    return (x + m - 1) // m * m


# ---------------------------------------------------------------------------
# Kernel
# ---------------------------------------------------------------------------
def _gru_kernel(m_ref, h_ref, wih_ref, whh_ref, brz_ref, bin_ref, bhn_ref,
                o_ref, *, H, Hp):
    # m_ref: (T, in_m)  h_ref: (T, H)
    # wih_ref: (in_m, 3*Hp)  whh_ref: (H, 3*Hp)   (gate slots 128-aligned)
    # brz_ref: (1, 2*Hp)  bin_ref/bhn_ref: (1, Hp)  (f32)
    f32 = jnp.float32
    wdtype = wih_ref.dtype

    h = h_ref[...]
    m = m_ref[...].astype(wdtype)   # no-op when activations match the weights
    hw = h.astype(wdtype)

    # r / z gates: accumulate the two matmul contributions directly
    # (v7x MRB accumulates in place; avoids a (T, 2Hp) f32 intermediate).
    # Column slices of the weight refs are 128-lane aligned (2*Hp % 128 == 0).
    s_rz = (jnp.dot(m, wih_ref[:, :2 * Hp], preferred_element_type=f32)
            + jnp.dot(hw, whh_ref[:, :2 * Hp], preferred_element_type=f32)
            + brz_ref[...])
    # sigmoid(x) = 0.5 * (1 + tanh(0.5 * x)) -> single EUP transcendental.
    rz = 0.5 * (jnp.tanh(0.5 * s_rz) + 1.0)
    r = rz[:, :Hp]
    z = rz[:, Hp:2 * Hp]

    # n gate keeps the input / hidden contributions separate because of the
    # r * (Whn h + bhn) term.
    gi_n = jnp.dot(m, wih_ref[:, 2 * Hp:], preferred_element_type=f32) + bin_ref[...]
    gh_n = jnp.dot(hw, whh_ref[:, 2 * Hp:], preferred_element_type=f32) + bhn_ref[...]
    n = jnp.tanh(gi_n + r * gh_n)

    hf = h.astype(f32)
    n_h = n[:, :H]          # prefix-lane view when H < Hp (cheap)
    z_h = z[:, :H]
    # h' = (1 - z) * n + z * h  ==  n + z * (h - n)
    o_ref[...] = (n_h + z_h * (hf - n_h)).astype(o_ref.dtype)


# ---------------------------------------------------------------------------
# One-time parameter preparation (hoisted out of the per-step wrapper)
# ---------------------------------------------------------------------------
def prepare_gru_params(w_ih, w_hh, b_ih, b_hh, dtype=jnp.float32):
    """Convert PyTorch-layout GRU params (w_ih:(3H,in_m), w_hh:(3H,H),
    b_*:(3H,)) into the kernel layout:
      wih_t: (in_m, 3*Hp), whh_t: (H, 3*Hp)  -- gate g in columns [g*Hp, g*Hp+H)
      b_rz:  (1, 2*Hp) = folded (b_ih + b_hh) for the r and z gates
      b_in / b_hn: (1, Hp)
    Hp = round_up(H, 128) so every gate slice is 128-lane aligned.

    `dtype` is the weight/compute dtype used on the MXU.  Preparing in
    jnp.bfloat16 (even for f32 activations) halves the resident weight VMEM
    and uses the fast MXU path; gate math stays f32 in-kernel.
    """
    H3, in_m = w_ih.shape
    H = H3 // 3
    Hp = _round_up(H, 128)

    def pack_w(w):  # (3H, K) -> (K, 3*Hp)
        K = w.shape[1]
        out = jnp.zeros((K, 3 * Hp), dtype)
        for g in range(3):
            out = out.at[:, g * Hp: g * Hp + H].set(
                jnp.transpose(w[g * H:(g + 1) * H, :]).astype(dtype))
        return out

    def pack_b(b):  # (H,) -> (1, Hp), f32 (added to f32 matmul outputs)
        return jnp.zeros((1, Hp), jnp.float32).at[0, :H].set(b.astype(jnp.float32))

    b_ih = b_ih.astype(jnp.float32)
    b_hh = b_hh.astype(jnp.float32)
    b_rz = jnp.concatenate(
        [pack_b(b_ih[:H] + b_hh[:H]), pack_b(b_ih[H:2 * H] + b_hh[H:2 * H])],
        axis=1)                                     # (1, 2*Hp)

    return {
        "wih_t": pack_w(w_ih),                      # (in_m, 3*Hp)
        "whh_t": pack_w(w_hh),                      # (H, 3*Hp)
        "b_rz": b_rz,
        "b_in": pack_b(b_ih[2 * H:]),
        "b_hn": pack_b(b_hh[2 * H:]),
        "H": H, "Hp": Hp, "in_m": in_m,
    }


# ---------------------------------------------------------------------------
# VMEM-footprint-aware tile selection
# ---------------------------------------------------------------------------
def _select_tile(N, in_m, H, Hp, act_bytes, w_bytes, max_tile, budget):
    # Resident (single-buffered) weights + biases.
    resident = (in_m + H) * 3 * Hp * w_bytes + 4 * Hp * 4
    # Streaming row tiles, double-buffered by the pipeline: m, h in; h' out.
    stream_per_row = 2 * (in_m + 2 * H) * act_bytes
    # f32 gate intermediates (s_rz, rz, gi_n, gh_n, n ~= 7*Hp; blend ~= 2*H)
    # plus worst-case casts of the m/h tile to the weight dtype.
    live_per_row = 4 * (7 * Hp + 2 * H) + (in_m + H) * w_bytes
    per_row = stream_per_row + live_per_row

    avail = budget - resident
    tile = avail // per_row if avail > per_row else 8
    tile = int(min(tile, max_tile))
    tile = max((tile // 8) * 8, 8)
    tile = min(tile, _round_up(N, 8))
    footprint = resident + tile * per_row
    return tile, int(footprint)


# ---------------------------------------------------------------------------
# Wrapper
# ---------------------------------------------------------------------------
def gru_cell_pallas(m_in, h_in, prep, *, max_tile_n=1024,
                    vmem_budget_bytes=44 * 1024 * 1024):
    """Single GRU step. m_in: (N, in_m), h_in: (N, H) -> (N, H) in h_in.dtype.

    vmem_budget_bytes defaults to 44 MiB (safe inside v7x's 64 MiB core);
    v5e/v6e callers with very large H/in_m may pass up to ~100 MiB to keep
    >=512-row tiles instead of shrinking the tile.
    """
    N, H = h_in.shape
    in_m = m_in.shape[1]
    Hp = prep["Hp"]
    assert prep["H"] == H and prep["in_m"] == in_m
    assert m_in.dtype == h_in.dtype, "h_v and m_v must share a dtype"

    cdtype = h_in.dtype
    wih, whh = prep["wih_t"], prep["whh_t"]   # used as stored: no per-call cast

    act_bytes = jnp.dtype(cdtype).itemsize
    w_bytes = jnp.dtype(wih.dtype).itemsize
    tile_n, footprint = _select_tile(N, in_m, H, Hp, act_bytes, w_bytes,
                                     max_tile_n, vmem_budget_bytes)
    # Generous limit over the estimated footprint; never below the 32 MiB
    # scoped default.
    vmem_limit = max(32 * 1024 * 1024, int(footprint * 1.25) + 4 * 1024 * 1024)

    grid = (pl.cdiv(N, tile_n),)
    kernel = functools.partial(_gru_kernel, H=H, Hp=Hp)

    # Constant-index weight/bias blocks: single-buffered VMEM residents.
    def resident_spec(shape):
        return pl.BlockSpec(shape, lambda i: (0, 0),
                            pipeline_mode=pl.Buffered(1))

    return pl.pallas_call(
        kernel,
        out_shape=jax.ShapeDtypeStruct((N, H), cdtype),
        grid_spec=pltpu.PrefetchScalarGridSpec(
            num_scalar_prefetch=0,
            grid=grid,
            in_specs=[
                pl.BlockSpec((tile_n, in_m), lambda i: (i, 0)),   # m rows
                pl.BlockSpec((tile_n, H), lambda i: (i, 0)),      # h rows
                resident_spec((in_m, 3 * Hp)),                    # W_ih^T
                resident_spec((H, 3 * Hp)),                       # W_hh^T
                resident_spec((1, 2 * Hp)),                       # b_rz (folded)
                resident_spec((1, Hp)),                           # b_in
                resident_spec((1, Hp)),                           # b_hn
            ],
            out_specs=pl.BlockSpec((tile_n, H), lambda i: (i, 0)),
        ),
        compiler_params=pltpu.CompilerParams(
            dimension_semantics=("parallel",),
            vmem_limit_bytes=vmem_limit,
        ),
    )(m_in, h_in, wih, whh, prep["b_rz"], prep["b_in"], prep["b_hn"])


def update_function_mpnn(h_v, m_v, prep):
    """Equivalent of UpdateFunction('mpnn').forward(h_v, m_v).

    h_v: (batch, nodes, H)   m_v: (batch, nodes, in_m)
    Output dtype matches h_v's dtype.
    """
    B, V, H = h_v.shape
    h_new = gru_cell_pallas(m_v.reshape(-1, m_v.shape[2]),
                            h_v.reshape(-1, H), prep)
    return h_new.reshape(B, V, H)


# ---------------------------------------------------------------------------
# Synthetic params + pure-JAX reference of the PyTorch GRU math
# ---------------------------------------------------------------------------
def init_gru_params(key, in_m, out):
    k1, k2, k3, k4 = jax.random.split(key, 4)
    scale = 1.0 / jnp.sqrt(out)
    return {
        "w_ih": jax.random.uniform(k1, (3 * out, in_m), jnp.float32, -scale, scale),
        "w_hh": jax.random.uniform(k2, (3 * out, out), jnp.float32, -scale, scale),
        "b_ih": jax.random.uniform(k3, (3 * out,), jnp.float32, -scale, scale),
        "b_hh": jax.random.uniform(k4, (3 * out,), jnp.float32, -scale, scale),
    }


def _reference_gru(m_in, h_in, p):
    gi = m_in @ p["w_ih"].T + p["b_ih"]
    gh = h_in @ p["w_hh"].T + p["b_hh"]
    H = h_in.shape[1]
    r = jax.nn.sigmoid(gi[:, :H] + gh[:, :H])
    z = jax.nn.sigmoid(gi[:, H:2 * H] + gh[:, H:2 * H])
    n = jnp.tanh(gi[:, 2 * H:] + r * gh[:, 2 * H:])
    return (1.0 - z) * n + z * h_in


if __name__ == "__main__":
    key = jax.random.PRNGKey(0)
    batch, nodes, in_m, out = 2, 8, 32, 32

    k_h, k_m, k_p = jax.random.split(key, 3)
    h_v = jax.random.normal(k_h, (batch, nodes, out), jnp.float32)
    m_v = jax.random.normal(k_m, (batch, nodes, in_m), jnp.float32)
    raw = init_gru_params(k_p, in_m, out)

    ref = _reference_gru(m_v.reshape(-1, in_m), h_v.reshape(-1, out), raw)
    ref = ref.reshape(batch, nodes, out)

    # 1) f32 activations + f32 weights (tight check)
    prep_f32 = prepare_gru_params(raw["w_ih"], raw["w_hh"], raw["b_ih"],
                                  raw["b_hh"], dtype=jnp.float32)
    h_new = jax.block_until_ready(update_function_mpnn(h_v, m_v, prep_f32))
    assert h_new.shape == h_v.shape and h_new.dtype == h_v.dtype
    assert jnp.allclose(h_new, ref, atol=1e-5, rtol=1e-5)

    # 2) bf16 activations + bf16 weights (halved activation + weight HBM
    #    traffic; gate math still f32 in-kernel)
    prep_bf16 = prepare_gru_params(raw["w_ih"], raw["w_hh"], raw["b_ih"],
                                   raw["b_hh"], dtype=jnp.bfloat16)
    h_bf16 = jax.block_until_ready(
        update_function_mpnn(h_v.astype(jnp.bfloat16),
                             m_v.astype(jnp.bfloat16), prep_bf16))
    assert h_bf16.dtype == jnp.bfloat16
    assert jnp.allclose(h_bf16.astype(jnp.float32), ref, atol=5e-2, rtol=5e-2)

    # 3) f32 activations + bf16 weights (fast MXU path with f32 accumulation;
    #    cast of the streamed tile happens inside the kernel, no extra HBM pass)
    h_mixed = jax.block_until_ready(update_function_mpnn(h_v, m_v, prep_bf16))
    assert h_mixed.dtype == jnp.float32
    assert jnp.allclose(h_mixed, ref, atol=5e-2, rtol=5e-2)

    print("KERNEL_OK")
</pallas_src>

<mosaic_0001>
module attributes {stable_mosaic.version = 11 : i64} {
  func.func @_gru_kernel(%arg0: i32, %arg1: memref<16x32xf32, #tpu.memory_space<vmem>>, %arg2: memref<16x32xf32, #tpu.memory_space<vmem>>, %arg3: memref<32x384xf32, #tpu.memory_space<vmem>>, %arg4: memref<32x384xf32, #tpu.memory_space<vmem>>, %arg5: memref<1x256xf32, #tpu.memory_space<vmem>>, %arg6: memref<1x128xf32, #tpu.memory_space<vmem>>, %arg7: memref<1x128xf32, #tpu.memory_space<vmem>>, %arg8: memref<16x32xf32, #tpu.memory_space<vmem>>) attributes {dimension_semantics = [#tpu.dimension_semantics<parallel>], iteration_bounds = array<i64: 1>, scalar_prefetch = 0 : i64, scratch_operands = 0 : i64, tpu.core_type = #tpu.core_type<tc>, window_params = [{transform_indices = @transform_0, window_bounds = array<i64: 16, 32>}, {transform_indices = @transform_1, window_bounds = array<i64: 16, 32>}, {pipeline_mode = #tpu.pipeline_mode<synchronous>, transform_indices = @transform_2, window_bounds = array<i64: 32, 384>}, {pipeline_mode = #tpu.pipeline_mode<synchronous>, transform_indices = @transform_3, window_bounds = array<i64: 32, 384>}, {pipeline_mode = #tpu.pipeline_mode<synchronous>, transform_indices = @transform_4, window_bounds = array<i64: 1, 256>}, {pipeline_mode = #tpu.pipeline_mode<synchronous>, transform_indices = @transform_5, window_bounds = array<i64: 1, 128>}, {pipeline_mode = #tpu.pipeline_mode<synchronous>, transform_indices = @transform_6, window_bounds = array<i64: 1, 128>}, {transform_indices = @transform_7, window_bounds = array<i64: 16, 32>}]} {
    %c0 = arith.constant 0 : index
    %c0_0 = arith.constant 0 : index
    %0 = vector.load %arg2[%c0, %c0_0] : memref<16x32xf32, #tpu.memory_space<vmem>>, vector<16x32xf32>
    %c0_1 = arith.constant 0 : index
    %c0_2 = arith.constant 0 : index
    %1 = vector.load %arg1[%c0_1, %c0_2] : memref<16x32xf32, #tpu.memory_space<vmem>>, vector<16x32xf32>
    %c0_3 = arith.constant 0 : index
    %c0_4 = arith.constant 0 : index
    %2 = vector.load %arg3[%c0_3, %c0_4] : memref<32x384xf32, #tpu.memory_space<vmem>>, vector<32x256xf32>
    %cst = arith.constant dense<0.000000e+00> : vector<16x256xf32>
    %3 = tpu.matmul %1, %2, %cst {dimension_numbers = #tpu.dot_dimension_numbers<[1], [0], [0], [1], [0, 0, 1, 1], [], []>} : vector<16x32xf32>, vector<32x256xf32>, vector<16x256xf32> -> vector<16x256xf32>
    %c0_5 = arith.constant 0 : index
    %c0_6 = arith.constant 0 : index
    %4 = vector.load %arg4[%c0_5, %c0_6] : memref<32x384xf32, #tpu.memory_space<vmem>>, vector<32x256xf32>
    %cst_7 = arith.constant dense<0.000000e+00> : vector<16x256xf32>
    %5 = tpu.matmul %0, %4, %cst_7 {dimension_numbers = #tpu.dot_dimension_numbers<[1], [0], [0], [1], [0, 0, 1, 1], [], []>} : vector<16x32xf32>, vector<32x256xf32>, vector<16x256xf32> -> vector<16x256xf32>
    %6 = arith.addf %3, %5 : vector<16x256xf32>
    %c0_8 = arith.constant 0 : index
    %c0_9 = arith.constant 0 : index
    %7 = vector.load %arg5[%c0_8, %c0_9] : memref<1x256xf32, #tpu.memory_space<vmem>>, vector<1x256xf32>
    %8 = vector.broadcast %7 : vector<1x256xf32> to vector<16x256xf32>
    %9 = arith.addf %6, %8 : vector<16x256xf32>
    %cst_10 = arith.constant 5.000000e-01 : f32
    %10 = vector.broadcast %cst_10 : f32 to vector<16x256xf32>
    %11 = arith.mulf %10, %9 : vector<16x256xf32>
    %12 = math.tanh %11 : vector<16x256xf32>
    %cst_11 = arith.constant 1.000000e+00 : f32
    %13 = vector.broadcast %cst_11 : f32 to vector<16x256xf32>
    %14 = arith.addf %12, %13 : vector<16x256xf32>
    %cst_12 = arith.constant 5.000000e-01 : f32
    %15 = vector.broadcast %cst_12 : f32 to vector<16x256xf32>
    %16 = arith.mulf %15, %14 : vector<16x256xf32>
    %17 = vector.extract_strided_slice %16 {offsets = [0, 0], sizes = [16, 128], strides = [1, 1]} : vector<16x256xf32> to vector<16x128xf32>
    %18 = vector.extract_strided_slice %16 {offsets = [0, 128], sizes = [16, 128], strides = [1, 1]} : vector<16x256xf32> to vector<16x128xf32>
    %c0_13 = arith.constant 0 : index
    %c256 = arith.constant 256 : index
    %19 = vector.load %arg3[%c0_13, %c256] : memref<32x384xf32, #tpu.memory_space<vmem>>, vector<32x128xf32>
    %cst_14 = arith.constant dense<0.000000e+00> : vector<16x128xf32>
    %20 = tpu.matmul %1, %19, %cst_14 {dimension_numbers = #tpu.dot_dimension_numbers<[1], [0], [0], [1], [0, 0, 1, 1], [], []>} : vector<16x32xf32>, vector<32x128xf32>, vector<16x128xf32> -> vector<16x128xf32>
    %c0_15 = arith.constant 0 : index
    %c0_16 = arith.constant 0 : index
    %21 = vector.load %arg6[%c0_15, %c0_16] : memref<1x128xf32, #tpu.memory_space<vmem>>, vector<1x128xf32>
    %22 = vector.broadcast %21 : vector<1x128xf32> to vector<16x128xf32>
    %23 = arith.addf %20, %22 : vector<16x128xf32>
    %c0_17 = arith.constant 0 : index
    %c256_18 = arith.constant 256 : index
    %24 = vector.load %arg4[%c0_17, %c256_18] : memref<32x384xf32, #tpu.memory_space<vmem>>, vector<32x128xf32>
    %cst_19 = arith.constant dense<0.000000e+00> : vector<16x128xf32>
    %25 = tpu.matmul %0, %24, %cst_19 {dimension_numbers = #tpu.dot_dimension_numbers<[1], [0], [0], [1], [0, 0, 1, 1], [], []>} : vector<16x32xf32>, vector<32x128xf32>, vector<16x128xf32> -> vector<16x128xf32>
    %c0_20 = arith.constant 0 : index
    %c0_21 = arith.constant 0 : index
    %26 = vector.load %arg7[%c0_20, %c0_21] : memref<1x128xf32, #tpu.memory_space<vmem>>, vector<1x128xf32>
    %27 = vector.broadcast %26 : vector<1x128xf32> to vector<16x128xf32>
    %28 = arith.addf %25, %27 : vector<16x128xf32>
    %29 = arith.mulf %17, %28 : vector<16x128xf32>
    %30 = arith.addf %23, %29 : vector<16x128xf32>
    %31 = math.tanh %30 : vector<16x128xf32>
    %32 = vector.extract_strided_slice %31 {offsets = [0, 0], sizes = [16, 32], strides = [1, 1]} : vector<16x128xf32> to vector<16x32xf32>
    %33 = vector.extract_strided_slice %18 {offsets = [0, 0], sizes = [16, 32], strides = [1, 1]} : vector<16x128xf32> to vector<16x32xf32>
    %34 = arith.subf %0, %32 : vector<16x32xf32>
    %35 = arith.mulf %33, %34 : vector<16x32xf32>
    %36 = arith.addf %32, %35 : vector<16x32xf32>
    %c0_22 = arith.constant 0 : index
    %c0_23 = arith.constant 0 : index
    %37 = vector.load %arg8[%c0_22, %c0_23] : memref<16x32xf32, #tpu.memory_space<vmem>>, vector<16x32xf32>
    tpu.vector_store %arg8[%c0_22, %c0_23], %36 {strides = array<i32>} : memref<16x32xf32, #tpu.memory_space<vmem>>, vector<16x32xf32>,
    return
  }
  func.func @transform_0(%arg0: i32) -> (i32, i32) {
    %c0_i32 = arith.constant 0 : i32
    %c0_i32_0 = arith.constant 0 : i32
    return %arg0, %c0_i32 : i32, i32
  }
  func.func @transform_1(%arg0: i32) -> (i32, i32) {
    %c0_i32 = arith.constant 0 : i32
    %c0_i32_0 = arith.constant 0 : i32
    return %arg0, %c0_i32 : i32, i32
  }
  func.func @transform_2(%arg0: i32) -> (i32, i32) {
    %c0_i32 = arith.constant 0 : i32
    %c0_i32_0 = arith.constant 0 : i32
    %c0_i32_1 = arith.constant 0 : i32
    return %c0_i32, %c0_i32_0 : i32, i32
  }
  func.func @transform_3(%arg0: i32) -> (i32, i32) {
    %c0_i32 = arith.constant 0 : i32
    %c0_i32_0 = arith.constant 0 : i32
    %c0_i32_1 = arith.constant 0 : i32
    return %c0_i32, %c0_i32_0 : i32, i32
  }
  func.func @transform_4(%arg0: i32) -> (i32, i32) {
    %c0_i32 = arith.constant 0 : i32
    %c0_i32_0 = arith.constant 0 : i32
    %c0_i32_1 = arith.constant 0 : i32
    return %c0_i32, %c0_i32_0 : i32, i32
  }
  func.func @transform_5(%arg0: i32) -> (i32, i32) {
    %c0_i32 = arith.constant 0 : i32
    %c0_i32_0 = arith.constant 0 : i32
    %c0_i32_1 = arith.constant 0 : i32
    return %c0_i32, %c0_i32_0 : i32, i32
  }
  func.func @transform_6(%arg0: i32) -> (i32, i32) {
    %c0_i32 = arith.constant 0 : i32
    %c0_i32_0 = arith.constant 0 : i32
    %c0_i32_1 = arith.constant 0 : i32
    return %c0_i32, %c0_i32_0 : i32, i32
  }
  func.func @transform_7(%arg0: i32) -> (i32, i32) {
    %c0_i32 = arith.constant 0 : i32
    %c0_i32_0 = arith.constant 0 : i32
    return %arg0, %c0_i32 : i32, i32
  }
}

</mosaic_0001>

<llo_original>
// kernel: tpu_custom_call.1
$region0: #{tpu_custom_call.1}
  #allocation0 [shape = 'u32[]', space=smem, size = 0x4, offset = 0x4, fixed_abs, tag = 'smem constant byte address 0x4 - core index']
  #allocation1 [shape = 'u32[72,128]{1,0:T(1,128)}', space=vmem, size = 0x9000, scoped, tag = 'internal scratch']
  %s0 = inlined_call_operand.hbm [shape: f32[16,32], index: 0, kind: input, shape index: {}]
  %s1 = inlined_call_operand.hbm [shape: f32[16,32], index: 1, kind: input, shape index: {}]
  %s2 = inlined_call_operand.hbm [shape: f32[32,384], index: 2, kind: input, shape index: {}]
  %s3 = inlined_call_operand.hbm [shape: f32[32,384], index: 3, kind: input, shape index: {}]
  %s4 = inlined_call_operand.vmem [shape: f32[1,256], index: 4, kind: input, shape index: {}]
  %s5 = inlined_call_operand.vmem [shape: f32[1,128], index: 5, kind: input, shape index: {}]
  %s6 = inlined_call_operand.vmem [shape: f32[1,128], index: 6, kind: input, shape index: {}]
  %s7 = inlined_call_operand.hbm [shape: f32[16,32], index: 7, kind: output, shape index: {}]
  %s8 = sld [smem:[#allocation0]]
  $region54: #{tpu_custom_call.1} parent=0
    _
  %s10 = ssub.s32 1, %s8
  %s11 = scalar_select 0, %s10, %s8
  $region1: #{tpu_custom_call.1} parent=0
    #allocation2 [shape = 'u8[8192]{0}', space=vmem, size = 0x2000, scoped, tag = 'input window, operand 0, single buffered']
    #allocation3 [shape = 's32[1]{0}', space=sflag, size = 0x4, scoped, tag = 'scoped memory for tpu_custom_call.1']
    #allocation4 [shape = 's32[1]{0}', space=sflag, size = 0x4, scoped, tag = 'scoped memory for tpu_custom_call.1']
    #allocation5 [shape = 'u8[8192]{0}', space=vmem, size = 0x2000, scoped, tag = 'input window, operand 1, single buffered']
    #allocation6 [shape = 's32[1]{0}', space=sflag, size = 0x4, scoped, tag = 'scoped memory for tpu_custom_call.1']
    #allocation7 [shape = 'u8[49152]{0}', space=vmem, size = 0xc000, scoped, tag = 'input window, operand 2, single buffered']
    #allocation8 [shape = 'u8[49152]{0}', space=vmem, size = 0xc000, scoped, tag = 'input window, operand 3, single buffered']
    #allocation9 [shape = 's32[1]{0}', space=sflag, size = 0x4, scoped, tag = 'scoped memory for tpu_custom_call.1']
    #allocation10 [shape = 'u8[8192]{0}', space=vmem, size = 0x2000, scoped, tag = 'output window, operand 0, single buffered']
    %12 = vsyncpa [#allocation3], 0
    %13 = vsyncpa [#allocation6], 0
    %14 = vsyncpa [#allocation9], 0
    %15 = vsyncpa [#allocation4], 0
    // Predicated region
    $region2: #{tpu_custom_call.1} parent=1 // pred_check
      _
    $region3: #{tpu_custom_call.1} parent=1 // pred_check_branch
      %17 = sbr.rel (0) target = $region5
    $region4: #{tpu_custom_call.1} parent=1 // pred_region
      %19 = vsyncadd [#allocation3], 0
      %s20 = sshll.u32 %s0, 4
      %s21 = int_to_ptr.hbm [resolvable:$true] %s20
      %s22 = sshll.u32 [#allocation2], 4
      %s23 = int_to_ptr.vmem [resolvable:$true] %s22
      %28 = dma.hbm_to_vmem [thread:$0]  %s21, 256, %s23, [#allocation3], 128, 128, 8
    $region5: #{tpu_custom_call.1} parent=1 // pred_fallthru
      _
    // Predicated region
    $region6: #{tpu_custom_call.1} parent=1 // pred_check
      _
    $region7: #{tpu_custom_call.1} parent=1 // pred_check_branch
      %30 = sbr.rel (0) target = $region9
    $region8: #{tpu_custom_call.1} parent=1 // pred_region
      %32 = vsyncadd [#allocation6], 0
      %s33 = sshll.u32 %s1, 4
      %s34 = int_to_ptr.hbm [resolvable:$true] %s33
      %s35 = sshll.u32 [#allocation5], 4
      %s36 = int_to_ptr.vmem [resolvable:$true] %s35
      %41 = dma.hbm_to_vmem [thread:$0]  %s34, 256, %s36, [#allocation6], 128, 128, 8
    $region9: #{tpu_custom_call.1} parent=1 // pred_fallthru
      _
    // Predicated region
    $region10: #{tpu_custom_call.1} parent=1 // pred_check
      _
    $region11: #{tpu_custom_call.1} parent=1 // pred_check_branch
      %43 = sbr.rel (0) target = $region13
    $region12: #{tpu_custom_call.1} parent=1 // pred_region
      %45 = vsyncadd [#allocation6], 0
      %s46 = sshll.u32 %s2, 4
      %s47 = int_to_ptr.hbm [resolvable:$true] %s46
      %s48 = sshll.u32 [#allocation7], 4
      %s49 = int_to_ptr.vmem [resolvable:$true] %s48
      %54 = dma.hbm_to_vmem [thread:$0]  %s47, 1536, %s49, [#allocation6], 384, 384, 24
    $region13: #{tpu_custom_call.1} parent=1 // pred_fallthru
      _
    // Predicated region
    $region14: #{tpu_custom_call.1} parent=1 // pred_check
      _
    $region15: #{tpu_custom_call.1} parent=1 // pred_check_branch
      %56 = sbr.rel (0) target = $region17
    $region16: #{tpu_custom_call.1} parent=1 // pred_region
      %58 = vsyncadd [#allocation9], 0
      %s59 = sshll.u32 %s3, 4
      %s60 = int_to_ptr.hbm [resolvable:$true] %s59
      %s61 = sshll.u32 [#allocation8], 4
      %s62 = int_to_ptr.vmem [resolvable:$true] %s61
      %67 = dma.hbm_to_vmem [thread:$0]  %s60, 1536, %s62, [#allocation9], 384, 384, 24
    $region17: #{tpu_custom_call.1} parent=1 // pred_fallthru
      _
    // Predicated region
    $region18: #{tpu_custom_call.1} parent=1 // pred_check
      _
    $region19: #{tpu_custom_call.1} parent=1 // pred_check_branch
      %69 = sbr.rel (0) target = $region21
    $region20: #{tpu_custom_call.1} parent=1 // pred_region
      _
    $region21: #{tpu_custom_call.1} parent=1 // pred_fallthru
      _
    // Predicated region
    $region22: #{tpu_custom_call.1} parent=1 // pred_check
      _
    $region23: #{tpu_custom_call.1} parent=1 // pred_check_branch
      %71 = sbr.rel (0) target = $region25
    $region24: #{tpu_custom_call.1} parent=1 // pred_region
      _
    $region25: #{tpu_custom_call.1} parent=1 // pred_fallthru
      _
    // Predicated region
    $region26: #{tpu_custom_call.1} parent=1 // pred_check
      _
    $region27: #{tpu_custom_call.1} parent=1 // pred_check_branch
      %73 = sbr.rel (0) target = $region29
    $region28: #{tpu_custom_call.1} parent=1 // pred_region
      _
    $region29: #{tpu_custom_call.1} parent=1 // pred_fallthru
      _
    // Predicated region
    $region30: #{tpu_custom_call.1} parent=1 // pred_check
      _
    $region31: #{tpu_custom_call.1} parent=1 // pred_check_branch
      %75 = sbr.rel (0) target = $region33
    $region32: #{tpu_custom_call.1} parent=1 // pred_region
      %77 = dma.done [#allocation3], 256
    $region33: #{tpu_custom_call.1} parent=1 // pred_fallthru
      _
    // Predicated region
    $region34: #{tpu_custom_call.1} parent=1 // pred_check
      _
    $region35: #{tpu_custom_call.1} parent=1 // pred_check_branch
      %79 = sbr.rel (0) target = $region37
    $region36: #{tpu_custom_call.1} parent=1 // pred_region
      %81 = dma.done [#allocation6], 256
    $region37: #{tpu_custom_call.1} parent=1 // pred_fallthru
      _
    // Predicated region
    $region38: #{tpu_custom_call.1} parent=1 // pred_check
      _
    $region39: #{tpu_custom_call.1} parent=1 // pred_check_branch
      %83 = sbr.rel (0) target = $region41
    $region40: #{tpu_custom_call.1} parent=1 // pred_region
      %85 = dma.done [#allocation6], 1536
    $region41: #{tpu_custom_call.1} parent=1 // pred_fallthru
      _
    // Predicated region
    $region42: #{tpu_custom_call.1} parent=1 // pred_check
      _
    $region43: #{tpu_custom_call.1} parent=1 // pred_check_branch
      %87 = sbr.rel (0) target = $region45
    $region44: #{tpu_custom_call.1} parent=1 // pred_region
      %89 = dma.done [#allocation9], 1536
    $region45: #{tpu_custom_call.1} parent=1 // pred_fallthru
      _
    %v90 = vld [vmem:[#allocation5] sm:$0xff]
    %v91 = vld [vmem:[#allocation5 + $0x8] sm:$0xff]
    %v92 = vld [vmem:[#allocation2] sm:$0xff]
    %v93 = vld [vmem:[#allocation2 + $0x8] sm:$0xff]
    %v94 = vld [vmem:[#allocation7] sm:$0xff]
    %v95 = vld [vmem:[#allocation7 + $0x8] sm:$0xff]
    %v96 = vld [vmem:[#allocation7 + $0x18] sm:$0xff]
    %v97 = vld [vmem:[#allocation7 + $0x20] sm:$0xff]
    %v98 = vld [vmem:[#allocation7 + $0x30] sm:$0xff]
    %v99 = vld [vmem:[#allocation7 + $0x38] sm:$0xff]
    %v100 = vld [vmem:[#allocation7 + $0x48] sm:$0xff]
    %v101 = vld [vmem:[#allocation7 + $0x50] sm:$0xff]
    %v102 = vld [vmem:[#allocation8] sm:$0xff]
    %v103 = vld [vmem:[#allocation8 + $0x8] sm:$0xff]
    %v104 = vld [vmem:[#allocation8 + $0x18] sm:$0xff]
    %v105 = vld [vmem:[#allocation8 + $0x20] sm:$0xff]
    %v106 = vld [vmem:[#allocation8 + $0x30] sm:$0xff]
    %v107 = vld [vmem:[#allocation8 + $0x38] sm:$0xff]
    %v108 = vld [vmem:[#allocation8 + $0x48] sm:$0xff]
    %v109 = vld [vmem:[#allocation8 + $0x50] sm:$0xff]
    %vm110 = vcmask 261120
    %v112 = vsel %vm110, %v90, 0
    %v115 = vsel %vm110, %v91, 0
    %117 = vmatpush.msra.mxu0 0.0
    %118 = vmatpush.msra.mxu0 0.0
    %119 = vmatpush.msra.mxu0 0.0
    %120 = vmatpush.msra.mxu0 0.0
    %121 = vmatpush.msra.mxu0 0.0
    %122 = vmatpush.msra.mxu0 0.0
    %123 = vmatpush.msra.mxu0 0.0
    %124 = vmatpush.msra.mxu0 0.0
    %125 = vmatpush.msra.mxu0 0.0
    %126 = vmatpush.msra.mxu0 0.0
    %127 = vmatpush.msra.mxu0 0.0
    %128 = vmatpush.msra.mxu0 0.0
    %129 = vmatpush.msra.mxu0 %v108
    %130 = vmatpush.msra.mxu0 %v106
    %131 = vmatpush.msra.mxu0 %v104
    %132 = vmatpush.msra.mxu0 %v102
    %133 = vmatmul.f32.gmra.mxu0 %v112
    %v134 = vpop.f32.mrf.mxu0
    %v135 = vadd.f32 0.0, %v134
    %136 = vmatmul.f32.gmra.mxu0 %v115
    %v137 = vpop.f32.mrf.mxu0
    %v138 = vadd.f32 0.0, %v137
    %139 = vdwg.mxu0
    %140 = vmatpush.msra.mxu0 0.0
    %141 = vmatpush.msra.mxu0 0.0
    %142 = vmatpush.msra.mxu0 0.0
    %143 = vmatpush.msra.mxu0 0.0
    %144 = vmatpush.msra.mxu0 0.0
    %145 = vmatpush.msra.mxu0 0.0
    %146 = vmatpush.msra.mxu0 0.0
    %147 = vmatpush.msra.mxu0 0.0
    %148 = vmatpush.msra.mxu0 0.0
    %149 = vmatpush.msra.mxu0 0.0
    %150 = vmatpush.msra.mxu0 0.0
    %151 = vmatpush.msra.mxu0 0.0
    %152 = vmatpush.msra.mxu0 %v109
    %153 = vmatpush.msra.mxu0 %v107
    %154 = vmatpush.msra.mxu0 %v105
    %155 = vmatpush.msra.mxu0 %v103
    %156 = vmatmul.f32.gmra.mxu0 %v112
    %v157 = vpop.f32.mrf.mxu0
    %v158 = vadd.f32 0.0, %v157
    %159 = vmatmul.f32.gmra.mxu0 %v115
    %v160 = vpop.f32.mrf.mxu0
    %v161 = vadd.f32 0.0, %v160
    %162 = vdwg.mxu0
    %v164 = vsel %vm110, %v92, 0
    %v167 = vsel %vm110, %v93, 0
    %169 = vmatpush.msra.mxu0 0.0
    %170 = vmatpush.msra.mxu0 0.0
    %171 = vmatpush.msra.mxu0 0.0
    %172 = vmatpush.msra.mxu0 0.0
    %173 = vmatpush.msra.mxu0 0.0
    %174 = vmatpush.msra.mxu0 0.0
    %175 = vmatpush.msra.mxu0 0.0
    %176 = vmatpush.msra.mxu0 0.0
    %177 = vmatpush.msra.mxu0 0.0
    %178 = vmatpush.msra.mxu0 0.0
    %179 = vmatpush.msra.mxu0 0.0
    %180 = vmatpush.msra.mxu0 0.0
    %181 = vmatpush.msra.mxu0 %v100
    %182 = vmatpush.msra.mxu0 %v98
    %183 = vmatpush.msra.mxu0 %v96
    %184 = vmatpush.msra.mxu0 %v94
    %185 = vmatmul.f32.gmra.mxu0 %v164
    %v186 = vpop.f32.mrf.mxu0
    %v187 = vadd.f32 %v135, %v186
    %188 = vmatmul.f32.gmra.mxu0 %v167
    %v189 = vpop.f32.mrf.mxu0
    %v190 = vadd.f32 %v138, %v189
    %191 = vdwg.mxu0
    %192 = vmatpush.msra.mxu0 0.0
    %193 = vmatpush.msra.mxu0 0.0
    %194 = vmatpush.msra.mxu0 0.0
    %195 = vmatpush.msra.mxu0 0.0
    %196 = vmatpush.msra.mxu0 0.0
    %197 = vmatpush.msra.mxu0 0.0
    %198 = vmatpush.msra.mxu0 0.0
    %199 = vmatpush.msra.mxu0 0.0
    %200 = vmatpush.msra.mxu0 0.0
    %201 = vmatpush.msra.mxu0 0.0
    %202 = vmatpush.msra.mxu0 0.0
    %203 = vmatpush.msra.mxu0 0.0
    %204 = vmatpush.msra.mxu0 %v101
    %205 = vmatpush.msra.mxu0 %v99
    %206 = vmatpush.msra.mxu0 %v97
    %207 = vmatpush.msra.mxu0 %v95
    %208 = vmatmul.f32.gmra.mxu0 %v164
    %v209 = vpop.f32.mrf.mxu0
    %v210 = vadd.f32 %v158, %v209
    %211 = vmatmul.f32.gmra.mxu0 %v167
    %v212 = vpop.f32.mrf.mxu0
    %v213 = vadd.f32 %v161, %v212
    %214 = vdwg.mxu0
    %v215 = vld [vmem:[%s4] sm:$0x3]
    %v217 = vperm.slane %v215, 0
    %v218 = vperm.slane %v215, 1
    %v221 = vadd.f32 %v187, %v217
    %v222 = vadd.f32 %v210, %v218
    %v223 = vadd.f32 %v190, %v217
    %v224 = vadd.f32 %v213, %v218
    %v225 = vmul.f32 %v221, 0.5
    %v226 = vmul.f32 %v222, 0.5
    %v227 = vmul.f32 %v223, 0.5
    %v228 = vmul.f32 %v224, 0.5
    %v229 = vtanh.pop %v225
    %v230 = vtanh.pop %v226
    %v231 = vtanh.pop %v227
    %v232 = vtanh.pop %v228
    %v233 = vadd.f32 %v229, 1.0
    %v234 = vadd.f32 %v230, 1.0
    %v235 = vadd.f32 %v231, 1.0
    %v236 = vadd.f32 %v232, 1.0
    %v237 = vmul.f32 %v233, 0.5
    %v238 = vmul.f32 %v234, 0.5
    %v239 = vmul.f32 %v235, 0.5
    %v240 = vmul.f32 %v236, 0.5
    %v241 = vld [vmem:[#allocation7 + $0x10] sm:$0xff]
    %v242 = vld [vmem:[#allocation7 + $0x28] sm:$0xff]
    %v243 = vld [vmem:[#allocation7 + $0x40] sm:$0xff]
    %v244 = vld [vmem:[#allocation7 + $0x58] sm:$0xff]
    %v245 = vld [vmem:[%s5] sm:$0x1]
    %v247 = vperm.slane %v245, 0
    %249 = vmatpush.msra.mxu0 0.0
    %250 = vmatpush.msra.mxu0 0.0
    %251 = vmatpush.msra.mxu0 0.0
    %252 = vmatpush.msra.mxu0 0.0
    %253 = vmatpush.msra.mxu0 0.0
    %254 = vmatpush.msra.mxu0 0.0
    %255 = vmatpush.msra.mxu0 0.0
    %256 = vmatpush.msra.mxu0 0.0
    %257 = vmatpush.msra.mxu0 0.0
    %258 = vmatpush.msra.mxu0 0.0
    %259 = vmatpush.msra.mxu0 0.0
    %260 = vmatpush.msra.mxu0 0.0
    %261 = vmatpush.msra.mxu0 %v244
    %262 = vmatpush.msra.mxu0 %v243
    %263 = vmatpush.msra.mxu0 %v242
    %264 = vmatpush.msra.mxu0 %v241
    %265 = vmatmul.f32.gmra.mxu0 %v164
    %v266 = vpop.f32.mrf.mxu0
    %v267 = vadd.f32 %v247, %v266
    %268 = vmatmul.f32.gmra.mxu0 %v167
    %v269 = vpop.f32.mrf.mxu0
    %v270 = vadd.f32 %v247, %v269
    %271 = vdwg.mxu0
    %v272 = vld [vmem:[#allocation8 + $0x10] sm:$0xff]
    %v273 = vld [vmem:[#allocation8 + $0x28] sm:$0xff]
    %v274 = vld [vmem:[#allocation8 + $0x40] sm:$0xff]
    %v275 = vld [vmem:[#allocation8 + $0x58] sm:$0xff]
    %v276 = vld [vmem:[%s6] sm:$0x1]
    %v278 = vperm.slane %v276, 0
    %280 = vmatpush.msra.mxu0 0.0
    %281 = vmatpush.msra.mxu0 0.0
    %282 = vmatpush.msra.mxu0 0.0
    %283 = vmatpush.msra.mxu0 0.0
    %284 = vmatpush.msra.mxu0 0.0
    %285 = vmatpush.msra.mxu0 0.0
    %286 = vmatpush.msra.mxu0 0.0
    %287 = vmatpush.msra.mxu0 0.0
    %288 = vmatpush.msra.mxu0 0.0
    %289 = vmatpush.msra.mxu0 0.0
    %290 = vmatpush.msra.mxu0 0.0
    %291 = vmatpush.msra.mxu0 0.0
    %292 = vmatpush.msra.mxu0 %v275
    %293 = vmatpush.msra.mxu0 %v274
    %294 = vmatpush.msra.mxu0 %v273
    %295 = vmatpush.msra.mxu0 %v272
    %296 = vmatmul.f32.gmra.mxu0 %v112
    %v297 = vpop.f32.mrf.mxu0
    %v298 = vadd.f32 %v278, %v297
    %299 = vmatmul.f32.gmra.mxu0 %v115
    %v300 = vpop.f32.mrf.mxu0
    %v301 = vadd.f32 %v278, %v300
    %302 = vdwg.mxu0
    %v303 = vmul.f32 %v237, %v298
    %v304 = vmul.f32 %v239, %v301
    %v305 = vadd.f32 %v267, %v303
    %v306 = vadd.f32 %v270, %v304
    %v307 = vtanh.pop %v305
    %v308 = vtanh.pop %v306
    %v309 = vsub.f32 %v90, %v307
    %v310 = vsub.f32 %v91, %v308
    %v311 = vmul.f32 %v238, %v309
    %v312 = vmul.f32 %v240, %v310
    %v313 = vadd.f32 %v307, %v311
    %v314 = vadd.f32 %v308, %v312
    %315 = vst.msk [vmem:[#allocation10] sm:$0xff] %vm110, %v313
    %316 = vst.msk [vmem:[#allocation10 + $0x8] sm:$0xff] %vm110, %v314
    // Predicated region
    $region46: #{tpu_custom_call.1} parent=1 // pred_check
      _
    $region47: #{tpu_custom_call.1} parent=1 // pred_check_branch
      %318 = sbr.rel (0) target = $region49
    $region48: #{tpu_custom_call.1} parent=1 // pred_region
      %320 = vsyncadd [#allocation4], 0
      %s321 = sshll.u32 [#allocation10], 4
      %s322 = int_to_ptr.vmem [resolvable:$true] %s321
      %s323 = sshll.u32 %s7, 4
      %s324 = int_to_ptr.hbm [resolvable:$true] %s323
      %329 = dma.vmem_to_hbm [thread:$0]  %s322, 256, %s324, [#allocation4], 128, 128, 8
    $region49: #{tpu_custom_call.1} parent=1 // pred_fallthru
      _
    // Predicated region
    $region50: #{tpu_custom_call.1} parent=1 // pred_check
      _
    $region51: #{tpu_custom_call.1} parent=1 // pred_check_branch
      %331 = sbr.rel (0) target = $region53
    $region52: #{tpu_custom_call.1} parent=1 // pred_region
      %333 = dma.done [#allocation4], 256
    $region53: #{tpu_custom_call.1} parent=1 // pred_fallthru
      _
    %334 = vsyncpa [#allocation3], 1
    %335 = vsyncpa [#allocation6], 1
    %336 = vsyncpa [#allocation9], 1
    %337 = vsyncpa [#allocation4], 1

</llo_original>
